<compile_context>
chip_gen: v5e
topology: v5e:2x2
jax: 0.10.0
libtpu: 0.0.40
codegen_flags: <defaults>
</compile_context>

<pallas_src>
import jax
import jax.numpy as jnp
from jax.experimental import pallas as pl
from jax.experimental.pallas import tpu as pltpu


def _round_up(x, m):
    return ((x + m - 1) // m) * m


def _cdiv(a, b):
    return (a + b - 1) // b


def _tpu_generation():
    """(num_tensorcores, mxu_rows, vmem_limit_bytes) with conservative fallbacks."""
    kind = ""
    try:
        kind = jax.devices()[0].device_kind.lower()
    except Exception:
        pass
    num_tc = 2 if ("v7" in kind or "v4" in kind) else 1       # v7x = 2 TC/chip
    mxu_rows = 128 if "v5" in kind else 256                    # v5e MXU is 128x128
    physical_vmem = 64 * 1024 * 1024 if "v7" in kind else 128 * 1024 * 1024
    try:  # refine with the hardware query when available
        info = pltpu.get_tpu_info()
        cap = getattr(info, "vmem_capacity_bytes", None)
        if cap:
            physical_vmem = int(cap)
        tc = getattr(info, "num_tensorcores", None)
        if tc:
            num_tc = int(tc)
    except Exception:
        pass
    # Explicit, generation-safe scoped-VMEM request (32 MiB fits every chip's
    # scoped budget; well under v7x's 64 MiB / v5e-v6e's 128 MiB physical).
    vmem_limit = min(physical_vmem // 2, 32 * 1024 * 1024)
    return num_tc, mxu_rows, vmem_limit


def _choose_tiles(bp, kp, np_store, x_item, w_item, o_item,
                  num_tc, mxu_rows, block_budget):
    """Pick (tm, tn) for one linear layer, counting every double-buffered block."""
    tm_pref = max(mxu_rows, 128)
    tm = bp if bp <= tm_pref else tm_pref

    # VMEM: 2*x_block + 2*W_block + 2*bias + 2*out_block must fit the budget.
    x_bytes = 2 * tm * kp * x_item
    per_col = 2 * (kp * w_item + tm * o_item + 4)      # W + out + bias, double buffered
    tn_max = (block_budget - x_bytes) // per_col
    tn_max = max(128, (tn_max // 128) * 128)

    if num_tc >= 2 and np_store > 128:
        # Balanced split across TensorCores: tile count a multiple of num_tc,
        # ragged last tile allowed (no storage padding -> no compounding waste).
        count = num_tc
        while _round_up(_cdiv(np_store, count), 128) > tn_max:
            count += num_tc
        tn = min(np_store, _round_up(_cdiv(np_store, count), 128))
    else:
        # Single TensorCore: fewer, wider tiles are strictly better.
        tn = min(np_store, tn_max)
    return tm, tn


# ---------------------------------------------------------------------------
# Streaming kernel: one Linear layer block   o = x[m-tile] @ W[:, n-tile] + b
# grid = (Bp/tm, Np/tn); the x row-block is full-K, the weight streams by tile.
# ---------------------------------------------------------------------------
def _linear_kernel(x_ref, w_ref, b_ref, o_ref):
    o_ref[...] = (
        jnp.dot(x_ref[...].astype(w_ref.dtype), w_ref[...],
                preferred_element_type=jnp.float32)
        + b_ref[...]
    ).astype(o_ref.dtype)


def pallas_linear_packed(x_p, w_p, b_p, *, tm, tn, out_dtype, vmem_limit):
    bp, kp = x_p.shape
    _, np_store = w_p.shape
    grid = (pl.cdiv(bp, tm), pl.cdiv(np_store, tn))
    return pl.pallas_call(
        _linear_kernel,
        out_shape=jax.ShapeDtypeStruct((bp, np_store), out_dtype),
        grid=grid,
        in_specs=[
            pl.BlockSpec((tm, kp), lambda m, n: (m, 0)),   # x row block, full K
            pl.BlockSpec((kp, tn), lambda m, n: (0, n)),   # full-K weight column block
            pl.BlockSpec((1, tn), lambda m, n: (0, n)),    # bias tile (f32)
        ],
        out_specs=pl.BlockSpec((tm, tn), lambda m, n: (m, n)),
        compiler_params=pltpu.CompilerParams(
            dimension_semantics=("parallel", "parallel"),
            vmem_limit_bytes=vmem_limit,
        ),
    )(x_p, w_p, b_p)


# ---------------------------------------------------------------------------
# Fused kernel: whole MLP in one pallas_call (all weights VMEM-resident).
# Used for multi-layer configs whose weights + activations comfortably fit VMEM.
# ---------------------------------------------------------------------------
def _make_fused_kernel(n_layers):
    def kernel(*refs):
        x_ref, o_ref = refs[0], refs[-1]
        h = x_ref[...]
        for i in range(n_layers):
            w_ref = refs[1 + 2 * i]
            b_ref = refs[2 + 2 * i]
            h = jnp.dot(h.astype(w_ref.dtype), w_ref[...],
                        preferred_element_type=jnp.float32) + b_ref[...]
            if i + 1 < n_layers:
                h = h.astype(w_ref.dtype)   # carry bf16 between layers
            # inter-layer dropout: identity in eval mode.
        o_ref[...] = h.astype(o_ref.dtype)
    return kernel


def pallas_mlp_fused(x_p, packed, *, out_dtype, vmem_limit):
    bp = x_p.shape[0]
    np_last = packed[-1][0].shape[1]
    args = [x_p]
    for (w_p, b_p) in packed:
        args += [w_p, b_p]
    return pl.pallas_call(
        _make_fused_kernel(len(packed)),
        out_shape=jax.ShapeDtypeStruct((bp, np_last), out_dtype),
        compiler_params=pltpu.CompilerParams(vmem_limit_bytes=vmem_limit),
    )(*args)


# ---------------------------------------------------------------------------
# MultilabelClassifier forward (eval-mode dropout = identity)
# ---------------------------------------------------------------------------
class MultilabelClassifier:
    def __init__(self, d_input=2048, d_hidden_1=0, d_hidden_2=0, d_hidden_3=0,
                 d_output=1543, key=None, weight_dtype=jnp.bfloat16,
                 act_dtype=jnp.bfloat16):
        if key is None:
            key = jax.random.PRNGKey(0)

        if d_hidden_1 == 0 and d_hidden_2 == 0 and d_hidden_3 == 0:
            dims = [(d_input, d_output)]
            self.n_hidden_layers = 0
        elif d_hidden_1 != 0 and d_hidden_2 == 0 and d_hidden_3 == 0:
            dims = [(d_input, d_hidden_1), (d_hidden_1, d_output)]
            self.n_hidden_layers = 1
        elif d_hidden_1 != 0 and d_hidden_2 != 0 and d_hidden_3 == 0:
            dims = [(d_input, d_hidden_1), (d_hidden_1, d_hidden_2),
                    (d_hidden_2, d_output)]
            self.n_hidden_layers = 2
        elif d_hidden_1 != 0 and d_hidden_2 != 0 and d_hidden_3 != 0:
            dims = [(d_input, d_hidden_1), (d_hidden_1, d_hidden_2),
                    (d_hidden_2, d_hidden_3), (d_hidden_3, d_output)]
            self.n_hidden_layers = 3
        else:
            raise ValueError('Invalid number of hidden layers.')

        self.d_output = d_output
        self.weight_dtype = jnp.dtype(weight_dtype)
        self.act_dtype = jnp.dtype(act_dtype)
        self.num_tc, self.mxu_rows, self.vmem_limit = _tpu_generation()
        self.block_budget = int(self.vmem_limit * 0.75)

        # PyTorch-Linear-like init (uniform +/- 1/sqrt(fan_in)).  Raw f32
        # weights [d_out, d_in] are kept only for the reference; packed weights
        # are [Kp, Np] in weight_dtype, padded to multiples of 128 only.
        self.params = []        # raw (w [d_out, d_in] f32, b [d_out] f32)
        self.packed = []        # (w_p [Kp, Np] weight_dtype, b_p [1, Np] f32)
        self.weight_bytes = 0
        kp = _round_up(d_input, 128)
        self.kp0 = kp
        for (fan_in, fan_out) in dims:
            key, kw, kb = jax.random.split(key, 3)
            bound = 1.0 / (fan_in ** 0.5)
            w = jax.random.uniform(kw, (fan_out, fan_in), jnp.float32,
                                   minval=-bound, maxval=bound)
            b = jax.random.uniform(kb, (fan_out,), jnp.float32,
                                   minval=-bound, maxval=bound)
            self.params.append((w, b))

            np_store = _round_up(fan_out, 128)   # pad to 128 only; tn chosen per call
            w_p = (jnp.zeros((kp, np_store), self.weight_dtype)
                   .at[:fan_in, :fan_out].set(w.T.astype(self.weight_dtype)))
            b_p = jnp.zeros((1, np_store), jnp.float32).at[0, :fan_out].set(b)
            self.packed.append((w_p, b_p))
            self.weight_bytes += (w_p.size * w_p.dtype.itemsize + b_p.size * 4)
            kp = np_store        # next layer's padded K == this layer's padded N

        self.n_layers = len(dims)
        self._forward = jax.jit(self._forward_impl)

    def _forward_impl(self, x):
        # dropout(x) in eval mode == identity (deterministic forward).
        B, d_in = x.shape
        x_item = self.act_dtype.itemsize
        sub = max(8, 32 // x_item)            # 16 rows for bf16, 8 for f32
        bp = _round_up(max(B, sub), sub)
        x_p = (jnp.zeros((bp, self.kp0), self.act_dtype)
               .at[:B, :d_in].set(x.astype(self.act_dtype)))

        # Fused single-call path: all weights + activations resident in VMEM.
        act_bytes = bp * self.kp0 * x_item + sum(
            bp * w_p.shape[1] * 4 for (w_p, _) in self.packed)
        if (self.n_layers >= 2
                and 2 * (self.weight_bytes + act_bytes) <= self.block_budget):
            h = pallas_mlp_fused(x_p, self.packed, out_dtype=jnp.float32,
                                 vmem_limit=self.vmem_limit)
            return h[:B, :self.d_output]

        # Streaming per-layer path.
        h = x_p
        w_item = self.weight_dtype.itemsize
        for li, (w_p, b_p) in enumerate(self.packed):
            last = (li == self.n_layers - 1)
            out_dtype = jnp.float32 if last else self.act_dtype
            kp, np_store = w_p.shape
            tm, tn = _choose_tiles(bp, kp, np_store,
                                   jnp.dtype(h.dtype).itemsize, w_item,
                                   jnp.dtype(out_dtype).itemsize,
                                   self.num_tc, self.mxu_rows, self.block_budget)
            h = pallas_linear_packed(h, w_p, b_p, tm=tm, tn=tn,
                                     out_dtype=out_dtype,
                                     vmem_limit=self.vmem_limit)
            # inter-layer dropout: identity in eval mode.
        return h[:B, :self.d_output]

    def __call__(self, x):
        return self._forward(x)


def _reference_forward(model, x):
    h = x
    for (w, b) in model.params:
        h = h @ w.T + b
    return h


if __name__ == "__main__":
    key = jax.random.PRNGKey(0)
    k_in, k_m1, k_m2 = jax.random.split(key, 3)

    # Config A: 2 hidden layers, small dims -> exercises the fused single-call path.
    batch, d_input, d_h1, d_h2, d_output = 8, 256, 128, 96, 200
    x = jax.random.normal(k_in, (batch, d_input), jnp.float32)
    model_a = MultilabelClassifier(d_input=d_input, d_hidden_1=d_h1,
                                   d_hidden_2=d_h2, d_hidden_3=0,
                                   d_output=d_output, key=k_m1)
    out_a = jax.block_until_ready(model_a(x))
    ref_a = _reference_forward(model_a, x)
    assert out_a.shape == (batch, d_output)
    assert jnp.allclose(out_a, ref_a, atol=3e-2, rtol=3e-2), "fused path mismatch"

    # Config B: no hidden layer -> exercises the tiled streaming path
    # (multiple balanced N tiles on 2-TC chips, single wide tile on 1-TC chips).
    d_in_b, d_out_b = 256, 384
    x_b = jax.random.normal(k_in, (batch, d_in_b), jnp.float32)
    model_b = MultilabelClassifier(d_input=d_in_b, d_hidden_1=0, d_hidden_2=0,
                                   d_hidden_3=0, d_output=d_out_b, key=k_m2)
    out_b = jax.block_until_ready(model_b(x_b))
    ref_b = _reference_forward(model_b, x_b)
    assert out_b.shape == (batch, d_out_b)
    assert jnp.allclose(out_b, ref_b, atol=3e-2, rtol=3e-2), "streaming path mismatch"

    print("KERNEL_OK")
</pallas_src>

<mosaic_0001>
module attributes {stable_mosaic.version = 11 : i64} {
  func.func @kernel(%arg0: memref<16x256xbf16, #tpu.memory_space<vmem>>, %arg1: memref<256x128xbf16, #tpu.memory_space<vmem>>, %arg2: memref<1x128xf32, #tpu.memory_space<vmem>>, %arg3: memref<128x128xbf16, #tpu.memory_space<vmem>>, %arg4: memref<1x128xf32, #tpu.memory_space<vmem>>, %arg5: memref<128x256xbf16, #tpu.memory_space<vmem>>, %arg6: memref<1x256xf32, #tpu.memory_space<vmem>>, %arg7: memref<16x256xf32, #tpu.memory_space<vmem>>) attributes {dimension_semantics = [], scalar_prefetch = 0 : i64, scratch_operands = 0 : i64, tpu.core_type = #tpu.core_type<tc>} {
    %c0 = arith.constant 0 : index
    %c0_0 = arith.constant 0 : index
    %0 = vector.load %arg0[%c0, %c0_0] : memref<16x256xbf16, #tpu.memory_space<vmem>>, vector<16x256xbf16>
    %c0_1 = arith.constant 0 : index
    %c0_2 = arith.constant 0 : index
    %1 = vector.load %arg1[%c0_1, %c0_2] : memref<256x128xbf16, #tpu.memory_space<vmem>>, vector<256x128xbf16>
    %cst = arith.constant dense<0.000000e+00> : vector<16x128xf32>
    %2 = tpu.matmul %0, %1, %cst {dimension_numbers = #tpu.dot_dimension_numbers<[1], [0], [0], [1], [0, 0, 1, 1], [], []>} : vector<16x256xbf16>, vector<256x128xbf16>, vector<16x128xf32> -> vector<16x128xf32>
    %c0_3 = arith.constant 0 : index
    %c0_4 = arith.constant 0 : index
    %3 = vector.load %arg2[%c0_3, %c0_4] : memref<1x128xf32, #tpu.memory_space<vmem>>, vector<1x128xf32>
    %4 = vector.broadcast %3 : vector<1x128xf32> to vector<16x128xf32>
    %5 = arith.addf %2, %4 : vector<16x128xf32>
    %6 = arith.truncf %5 : vector<16x128xf32> to vector<16x128xbf16>
    %c0_5 = arith.constant 0 : index
    %c0_6 = arith.constant 0 : index
    %7 = vector.load %arg3[%c0_5, %c0_6] : memref<128x128xbf16, #tpu.memory_space<vmem>>, vector<128x128xbf16>
    %cst_7 = arith.constant dense<0.000000e+00> : vector<16x128xf32>
    %8 = tpu.matmul %6, %7, %cst_7 {dimension_numbers = #tpu.dot_dimension_numbers<[1], [0], [0], [1], [0, 0, 1, 1], [], []>} : vector<16x128xbf16>, vector<128x128xbf16>, vector<16x128xf32> -> vector<16x128xf32>
    %c0_8 = arith.constant 0 : index
    %c0_9 = arith.constant 0 : index
    %9 = vector.load %arg4[%c0_8, %c0_9] : memref<1x128xf32, #tpu.memory_space<vmem>>, vector<1x128xf32>
    %10 = vector.broadcast %9 : vector<1x128xf32> to vector<16x128xf32>
    %11 = arith.addf %8, %10 : vector<16x128xf32>
    %12 = arith.truncf %11 : vector<16x128xf32> to vector<16x128xbf16>
    %c0_10 = arith.constant 0 : index
    %c0_11 = arith.constant 0 : index
    %13 = vector.load %arg5[%c0_10, %c0_11] : memref<128x256xbf16, #tpu.memory_space<vmem>>, vector<128x256xbf16>
    %cst_12 = arith.constant dense<0.000000e+00> : vector<16x256xf32>
    %14 = tpu.matmul %12, %13, %cst_12 {dimension_numbers = #tpu.dot_dimension_numbers<[1], [0], [0], [1], [0, 0, 1, 1], [], []>} : vector<16x128xbf16>, vector<128x256xbf16>, vector<16x256xf32> -> vector<16x256xf32>
    %c0_13 = arith.constant 0 : index
    %c0_14 = arith.constant 0 : index
    %15 = vector.load %arg6[%c0_13, %c0_14] : memref<1x256xf32, #tpu.memory_space<vmem>>, vector<1x256xf32>
    %16 = vector.broadcast %15 : vector<1x256xf32> to vector<16x256xf32>
    %17 = arith.addf %14, %16 : vector<16x256xf32>
    %c0_15 = arith.constant 0 : index
    %c0_16 = arith.constant 0 : index
    %18 = vector.load %arg7[%c0_15, %c0_16] : memref<16x256xf32, #tpu.memory_space<vmem>>, vector<16x256xf32>
    tpu.vector_store %arg7[%c0_15, %c0_16], %17 {strides = array<i32>} : memref<16x256xf32, #tpu.memory_space<vmem>>, vector<16x256xf32>,
    return
  }
}

</mosaic_0001>

<llo_original>
// kernel: _forward_impl.1
$region0: #{_forward_impl.1}
  #allocation0 [shape = 'u32[]', space=smem, size = 0x4, offset = 0x4, fixed_abs, tag = 'smem constant byte address 0x4 - core index']
  #allocation1 [shape = 'u32[72,128]{1,0:T(1,128)}', space=vmem, size = 0x9000, scoped, tag = 'internal scratch']
  %s0 = inlined_call_operand.vmem [shape: bf16[16,256], index: 0, kind: input, shape index: {}]
  %s1 = inlined_call_operand.hbm [shape: bf16[256,128], index: 1, kind: input, shape index: {}]
  %s2 = inlined_call_operand.vmem [shape: f32[1,128], index: 2, kind: input, shape index: {}]
  %s3 = inlined_call_operand.hbm [shape: bf16[128,128], index: 3, kind: input, shape index: {}]
  %s4 = inlined_call_operand.vmem [shape: f32[1,128], index: 4, kind: input, shape index: {}]
  %s5 = inlined_call_operand.hbm [shape: bf16[128,256], index: 5, kind: input, shape index: {}]
  %s6 = inlined_call_operand.vmem [shape: f32[1,256], index: 6, kind: input, shape index: {}]
  %s7 = inlined_call_operand.vmem [shape: f32[16,256], index: 7, kind: output, shape index: {}]
  %s8 = sld [smem:[#allocation0]]
  $region50: #{_forward_impl.1} parent=0
    _
  %s10 = ssub.s32 1, %s8
  %s11 = scalar_select 0, %s10, %s8
  $region1: #{_forward_impl.1} parent=0
    #allocation2 [shape = 'u8[65536]{0}', space=vmem, size = 0x10000, scoped, tag = 'input window, operand 1, single buffered']
    #allocation3 [shape = 's32[1]{0}', space=sflag, size = 0x4, scoped, tag = 'scoped memory for _forward_impl.1']
    #allocation4 [shape = 'u8[32768]{0}', space=vmem, size = 0x8000, scoped, tag = 'input window, operand 3, single buffered']
    #allocation5 [shape = 's32[1]{0}', space=sflag, size = 0x4, scoped, tag = 'scoped memory for _forward_impl.1']
    #allocation6 [shape = 'u8[65536]{0}', space=vmem, size = 0x10000, scoped, tag = 'input window, operand 5, single buffered']
    %12 = vsyncpa [#allocation3], 0
    %13 = vsyncpa [#allocation5], 0
    // Predicated region
    $region2: #{_forward_impl.1} parent=1 // pred_check
      _
    $region3: #{_forward_impl.1} parent=1 // pred_check_branch
      %15 = sbr.rel (0) target = $region5
    $region4: #{_forward_impl.1} parent=1 // pred_region
      _
    $region5: #{_forward_impl.1} parent=1 // pred_fallthru
      _
    // Predicated region
    $region6: #{_forward_impl.1} parent=1 // pred_check
      _
    $region7: #{_forward_impl.1} parent=1 // pred_check_branch
      %17 = sbr.rel (0) target = $region9
    $region8: #{_forward_impl.1} parent=1 // pred_region
      %19 = vsyncadd [#allocation3], 0
      %s20 = sshll.u32 %s1, 4
      %s21 = int_to_ptr.hbm [resolvable:$true] %s20
      %s22 = sshll.u32 [#allocation2], 4
      %s23 = int_to_ptr.vmem [resolvable:$true] %s22
      %28 = dma.hbm_to_vmem [thread:$0]  %s21, 2048, %s23, [#allocation3], 64, 64, 4
    $region9: #{_forward_impl.1} parent=1 // pred_fallthru
      _
    // Predicated region
    $region10: #{_forward_impl.1} parent=1 // pred_check
      _
    $region11: #{_forward_impl.1} parent=1 // pred_check_branch
      %30 = sbr.rel (0) target = $region13
    $region12: #{_forward_impl.1} parent=1 // pred_region
      _
    $region13: #{_forward_impl.1} parent=1 // pred_fallthru
      _
    // Predicated region
    $region14: #{_forward_impl.1} parent=1 // pred_check
      _
    $region15: #{_forward_impl.1} parent=1 // pred_check_branch
      %32 = sbr.rel (0) target = $region17
    $region16: #{_forward_impl.1} parent=1 // pred_region
      %34 = vsyncadd [#allocation5], 0
      %s35 = sshll.u32 %s3, 4
      %s36 = int_to_ptr.hbm [resolvable:$true] %s35
      %s37 = sshll.u32 [#allocation4], 4
      %s38 = int_to_ptr.vmem [resolvable:$true] %s37
      %43 = dma.hbm_to_vmem [thread:$0]  %s36, 1024, %s38, [#allocation5], 64, 64, 4
    $region17: #{_forward_impl.1} parent=1 // pred_fallthru
      _
    // Predicated region
    $region18: #{_forward_impl.1} parent=1 // pred_check
      _
    $region19: #{_forward_impl.1} parent=1 // pred_check_branch
      %45 = sbr.rel (0) target = $region21
    $region20: #{_forward_impl.1} parent=1 // pred_region
      _
    $region21: #{_forward_impl.1} parent=1 // pred_fallthru
      _
    // Predicated region
    $region22: #{_forward_impl.1} parent=1 // pred_check
      _
    $region23: #{_forward_impl.1} parent=1 // pred_check_branch
      %47 = sbr.rel (0) target = $region25
    $region24: #{_forward_impl.1} parent=1 // pred_region
      %49 = vsyncadd [#allocation5], 0
      %s50 = sshll.u32 %s5, 4
      %s51 = int_to_ptr.hbm [resolvable:$true] %s50
      %s52 = sshll.u32 [#allocation6], 4
      %s53 = int_to_ptr.vmem [resolvable:$true] %s52
      %58 = dma.hbm_to_vmem [thread:$0]  %s51, 2048, %s53, [#allocation5], 128, 128, 8
    $region25: #{_forward_impl.1} parent=1 // pred_fallthru
      _
    // Predicated region
    $region26: #{_forward_impl.1} parent=1 // pred_check
      _
    $region27: #{_forward_impl.1} parent=1 // pred_check_branch
      %60 = sbr.rel (0) target = $region29
    $region28: #{_forward_impl.1} parent=1 // pred_region
      _
    $region29: #{_forward_impl.1} parent=1 // pred_fallthru
      _
    // Predicated region
    $region30: #{_forward_impl.1} parent=1 // pred_check
      _
    $region31: #{_forward_impl.1} parent=1 // pred_check_branch
      %62 = sbr.rel (0) target = $region33
    $region32: #{_forward_impl.1} parent=1 // pred_region
      %64 = dma.done [#allocation3], 2048
    $region33: #{_forward_impl.1} parent=1 // pred_fallthru
      _
    // Predicated region
    $region34: #{_forward_impl.1} parent=1 // pred_check
      _
    $region35: #{_forward_impl.1} parent=1 // pred_check_branch
      %66 = sbr.rel (0) target = $region37
    $region36: #{_forward_impl.1} parent=1 // pred_region
      %68 = dma.done [#allocation5], 1024
    $region37: #{_forward_impl.1} parent=1 // pred_fallthru
      _
    // Predicated region
    $region38: #{_forward_impl.1} parent=1 // pred_check
      _
    $region39: #{_forward_impl.1} parent=1 // pred_check_branch
      %70 = sbr.rel (0) target = $region41
    $region40: #{_forward_impl.1} parent=1 // pred_region
      %72 = dma.done [#allocation5], 2048
    $region41: #{_forward_impl.1} parent=1 // pred_fallthru
      _
    %v73 = vld [vmem:[%s0] sm:$0xff]
    %v74 = vld [vmem:[%s0 + $0x8] sm:$0xff]
    %v75 = vld [vmem:[#allocation2] sm:$0xf]
    %v76 = vld [vmem:[#allocation2 + $0x4] sm:$0xf]
    %v77 = vld [vmem:[#allocation2 + $0x8] sm:$0xf]
    %v78 = vld [vmem:[#allocation2 + $0xc] sm:$0xf]
    %v79 = vld [vmem:[#allocation2 + $0x10] sm:$0xf]
    %v80 = vld [vmem:[#allocation2 + $0x14] sm:$0xf]
    %v81 = vld [vmem:[#allocation2 + $0x18] sm:$0xf]
    %v82 = vld [vmem:[#allocation2 + $0x1c] sm:$0xf]
    %v83 = vld [vmem:[#allocation2 + $0x20] sm:$0xf]
    %v84 = vld [vmem:[#allocation2 + $0x24] sm:$0xf]
    %v85 = vld [vmem:[#allocation2 + $0x28] sm:$0xf]
    %v86 = vld [vmem:[#allocation2 + $0x2c] sm:$0xf]
    %v87 = vld [vmem:[#allocation2 + $0x30] sm:$0xf]
    %v88 = vld [vmem:[#allocation2 + $0x34] sm:$0xf]
    %v89 = vld [vmem:[#allocation2 + $0x38] sm:$0xf]
    %v90 = vld [vmem:[#allocation2 + $0x3c] sm:$0xf]
    %v91 = vld [vmem:[#allocation2 + $0x40] sm:$0xf]
    %v92 = vld [vmem:[#allocation2 + $0x44] sm:$0xf]
    %v93 = vld [vmem:[#allocation2 + $0x48] sm:$0xf]
    %v94 = vld [vmem:[#allocation2 + $0x4c] sm:$0xf]
    %v95 = vld [vmem:[#allocation2 + $0x50] sm:$0xf]
    %v96 = vld [vmem:[#allocation2 + $0x54] sm:$0xf]
    %v97 = vld [vmem:[#allocation2 + $0x58] sm:$0xf]
    %v98 = vld [vmem:[#allocation2 + $0x5c] sm:$0xf]
    %v99 = vld [vmem:[#allocation2 + $0x60] sm:$0xf]
    %v100 = vld [vmem:[#allocation2 + $0x64] sm:$0xf]
    %v101 = vld [vmem:[#allocation2 + $0x68] sm:$0xf]
    %v102 = vld [vmem:[#allocation2 + $0x6c] sm:$0xf]
    %v103 = vld [vmem:[#allocation2 + $0x70] sm:$0xf]
    %v104 = vld [vmem:[#allocation2 + $0x74] sm:$0xf]
    %v105 = vld [vmem:[#allocation2 + $0x78] sm:$0xf]
    %v106 = vld [vmem:[#allocation2 + $0x7c] sm:$0xf]
    %v107 = vld [vmem:[%s2] sm:$0x1]
    %v109 = vperm.slane %v107, 0
    %v113 = vunpack.c.l.b16 %v73
    %v114 = vunpack.c.h.b16 %v73
    %v115 = vunpack.c.l.b16 %v74
    %v116 = vunpack.c.h.b16 %v74
    %v117 = vpack.c.b16 %v115, %v113
    %v118 = vpack.c.b16 %v116, %v114
    %v153 = vunpack.c.l.b16 %v75
    %v154 = vunpack.c.l.b16 %v76
    %v155 = vunpack.c.l.b16 %v77
    %v156 = vunpack.c.l.b16 %v78
    %v157 = vunpack.c.l.b16 %v79
    %v158 = vunpack.c.l.b16 %v80
    %v159 = vunpack.c.l.b16 %v81
    %v160 = vunpack.c.l.b16 %v82
    %v161 = vunpack.c.l.b16 %v83
    %v162 = vunpack.c.l.b16 %v84
    %v163 = vunpack.c.l.b16 %v85
    %v164 = vunpack.c.l.b16 %v86
    %v165 = vunpack.c.l.b16 %v87
    %v166 = vunpack.c.l.b16 %v88
    %v167 = vunpack.c.l.b16 %v89
    %v168 = vunpack.c.l.b16 %v90
    %v169 = vunpack.c.l.b16 %v91
    %v170 = vunpack.c.l.b16 %v92
    %v171 = vunpack.c.l.b16 %v93
    %v172 = vunpack.c.l.b16 %v94
    %v173 = vunpack.c.l.b16 %v95
    %v174 = vunpack.c.l.b16 %v96
    %v175 = vunpack.c.l.b16 %v97
    %v176 = vunpack.c.l.b16 %v98
    %v177 = vunpack.c.l.b16 %v99
    %v178 = vunpack.c.l.b16 %v100
    %v179 = vunpack.c.l.b16 %v101
    %v180 = vunpack.c.l.b16 %v102
    %v181 = vunpack.c.l.b16 %v103
    %v182 = vunpack.c.l.b16 %v104
    %v183 = vunpack.c.l.b16 %v105
    %v184 = vunpack.c.l.b16 %v106
    %v185 = vpack.c.b16 %v154, %v153
    %v186 = vpack.c.b16 %v156, %v155
    %v187 = vpack.c.b16 %v158, %v157
    %v188 = vpack.c.b16 %v160, %v159
    %v189 = vpack.c.b16 %v162, %v161
    %v190 = vpack.c.b16 %v164, %v163
    %v191 = vpack.c.b16 %v166, %v165
    %v192 = vpack.c.b16 %v168, %v167
    %v193 = vpack.c.b16 %v170, %v169
    %v194 = vpack.c.b16 %v172, %v171
    %v195 = vpack.c.b16 %v174, %v173
    %v196 = vpack.c.b16 %v176, %v175
    %v197 = vpack.c.b16 %v178, %v177
    %v198 = vpack.c.b16 %v180, %v179
    %v199 = vpack.c.b16 %v182, %v181
    %v200 = vpack.c.b16 %v184, %v183
    %217 = vmatpush.bf16.msra.mxu0 %v192
    %218 = vmatpush.bf16.msra.mxu0 %v191
    %219 = vmatpush.bf16.msra.mxu0 %v190
    %220 = vmatpush.bf16.msra.mxu0 %v189
    %221 = vmatpush.bf16.msra.mxu0 %v188
    %222 = vmatpush.bf16.msra.mxu0 %v187
    %223 = vmatpush.bf16.msra.mxu0 %v186
    %224 = vmatpush.bf16.msra.mxu0 %v185
    %225 = vmatmul.bf16.gmra.mxu0 %v117
    %v226 = vpop.f32.mrf.mxu0
    %v227 = vadd.f32 %v109, %v226
    %v228 = vpop.f32.mrf.mxu0
    %v229 = vadd.f32 %v109, %v228
    %230 = vdwg.mxu0
    %231 = vmatpush.bf16.msra.mxu0 %v200
    %232 = vmatpush.bf16.msra.mxu0 %v199
    %233 = vmatpush.bf16.msra.mxu0 %v198
    %234 = vmatpush.bf16.msra.mxu0 %v197
    %235 = vmatpush.bf16.msra.mxu0 %v196
    %236 = vmatpush.bf16.msra.mxu0 %v195
    %237 = vmatpush.bf16.msra.mxu0 %v194
    %238 = vmatpush.bf16.msra.mxu0 %v193
    %239 = vmatmul.bf16.gmra.mxu0 %v118
    %v240 = vpop.f32.mrf.mxu0
    %v241 = vadd.f32 %v227, %v240
    %v242 = vpop.f32.mrf.mxu0
    %v243 = vadd.f32 %v229, %v242
    %244 = vdwg.mxu0
    %v245 = vpack.c.bf16 %v243, %v241
    %v246 = vld [vmem:[#allocation4] sm:$0xf]
    %v247 = vld [vmem:[#allocation4 + $0x4] sm:$0xf]
    %v248 = vld [vmem:[#allocation4 + $0x8] sm:$0xf]
    %v249 = vld [vmem:[#allocation4 + $0xc] sm:$0xf]
    %v250 = vld [vmem:[#allocation4 + $0x10] sm:$0xf]
    %v251 = vld [vmem:[#allocation4 + $0x14] sm:$0xf]
    %v252 = vld [vmem:[#allocation4 + $0x18] sm:$0xf]
    %v253 = vld [vmem:[#allocation4 + $0x1c] sm:$0xf]
    %v254 = vld [vmem:[#allocation4 + $0x20] sm:$0xf]
    %v255 = vld [vmem:[#allocation4 + $0x24] sm:$0xf]
    %v256 = vld [vmem:[#allocation4 + $0x28] sm:$0xf]
    %v257 = vld [vmem:[#allocation4 + $0x2c] sm:$0xf]
    %v258 = vld [vmem:[#allocation4 + $0x30] sm:$0xf]
    %v259 = vld [vmem:[#allocation4 + $0x34] sm:$0xf]
    %v260 = vld [vmem:[#allocation4 + $0x38] sm:$0xf]
    %v261 = vld [vmem:[#allocation4 + $0x3c] sm:$0xf]
    %v262 = vld [vmem:[%s4] sm:$0x1]
    %v264 = vperm.slane %v262, 0
    %v282 = vunpack.c.l.b16 %v246
    %v283 = vunpack.c.l.b16 %v247
    %v284 = vunpack.c.l.b16 %v248
    %v285 = vunpack.c.l.b16 %v249
    %v286 = vunpack.c.l.b16 %v250
    %v287 = vunpack.c.l.b16 %v251
    %v288 = vunpack.c.l.b16 %v252
    %v289 = vunpack.c.l.b16 %v253
    %v290 = vunpack.c.l.b16 %v254
    %v291 = vunpack.c.l.b16 %v255
    %v292 = vunpack.c.l.b16 %v256
    %v293 = vunpack.c.l.b16 %v257
    %v294 = vunpack.c.l.b16 %v258
    %v295 = vunpack.c.l.b16 %v259
    %v296 = vunpack.c.l.b16 %v260
    %v297 = vunpack.c.l.b16 %v261
    %v298 = vpack.c.b16 %v283, %v282
    %v299 = vpack.c.b16 %v285, %v284
    %v300 = vpack.c.b16 %v287, %v286
    %v301 = vpack.c.b16 %v289, %v288
    %v302 = vpack.c.b16 %v291, %v290
    %v303 = vpack.c.b16 %v293, %v292
    %v304 = vpack.c.b16 %v295, %v294
    %v305 = vpack.c.b16 %v297, %v296
    %314 = vmatpush.bf16.msra.mxu0 %v305
    %315 = vmatpush.bf16.msra.mxu0 %v304
    %316 = vmatpush.bf16.msra.mxu0 %v303
    %317 = vmatpush.bf16.msra.mxu0 %v302
    %318 = vmatpush.bf16.msra.mxu0 %v301
    %319 = vmatpush.bf16.msra.mxu0 %v300
    %320 = vmatpush.bf16.msra.mxu0 %v299
    %321 = vmatpush.bf16.msra.mxu0 %v298
    %322 = vmatmul.bf16.gmra.mxu0 %v245
    %v323 = vpop.f32.mrf.mxu0
    %v324 = vadd.f32 %v264, %v323
    %v325 = vpop.f32.mrf.mxu0
    %v326 = vadd.f32 %v264, %v325
    %327 = vdwg.mxu0
    %v328 = vpack.c.bf16 %v326, %v324
    %v329 = vld [vmem:[#allocation6] sm:$0xff]
    %v330 = vld [vmem:[#allocation6 + $0x8] sm:$0xff]
    %v331 = vld [vmem:[#allocation6 + $0x10] sm:$0xff]
    %v332 = vld [vmem:[#allocation6 + $0x18] sm:$0xff]
    %v333 = vld [vmem:[#allocation6 + $0x20] sm:$0xff]
    %v334 = vld [vmem:[#allocation6 + $0x28] sm:$0xff]
    %v335 = vld [vmem:[#allocation6 + $0x30] sm:$0xff]
    %v336 = vld [vmem:[#allocation6 + $0x38] sm:$0xff]
    %v337 = vld [vmem:[#allocation6 + $0x40] sm:$0xff]
    %v338 = vld [vmem:[#allocation6 + $0x48] sm:$0xff]
    %v339 = vld [vmem:[#allocation6 + $0x50] sm:$0xff]
    %v340 = vld [vmem:[#allocation6 + $0x58] sm:$0xff]
    %v341 = vld [vmem:[#allocation6 + $0x60] sm:$0xff]
    %v342 = vld [vmem:[#allocation6 + $0x68] sm:$0xff]
    %v343 = vld [vmem:[#allocation6 + $0x70] sm:$0xff]
    %v344 = vld [vmem:[#allocation6 + $0x78] sm:$0xff]
    %v345 = vld [vmem:[%s6] sm:$0x3]
    %v347 = vperm.slane %v345, 0
    %v348 = vperm.slane %v345, 1
    %v367 = vunpack.c.l.b16 %v329
    %v368 = vunpack.c.h.b16 %v329
    %v369 = vunpack.c.l.b16 %v330
    %v370 = vunpack.c.h.b16 %v330
    %v371 = vunpack.c.l.b16 %v331
    %v372 = vunpack.c.h.b16 %v331
    %v373 = vunpack.c.l.b16 %v332
    %v374 = vunpack.c.h.b16 %v332
    %v375 = vunpack.c.l.b16 %v333
    %v376 = vunpack.c.h.b16 %v333
    %v377 = vunpack.c.l.b16 %v334
    %v378 = vunpack.c.h.b16 %v334
    %v379 = vunpack.c.l.b16 %v335
    %v380 = vunpack.c.h.b16 %v335
    %v381 = vunpack.c.l.b16 %v336
    %v382 = vunpack.c.h.b16 %v336
    %v383 = vunpack.c.l.b16 %v337
    %v384 = vunpack.c.h.b16 %v337
    %v385 = vunpack.c.l.b16 %v338
    %v386 = vunpack.c.h.b16 %v338
    %v387 = vunpack.c.l.b16 %v339
    %v388 = vunpack.c.h.b16 %v339
    %v389 = vunpack.c.l.b16 %v340
    %v390 = vunpack.c.h.b16 %v340
    %v391 = vunpack.c.l.b16 %v341
    %v392 = vunpack.c.h.b16 %v341
    %v393 = vunpack.c.l.b16 %v342
    %v394 = vunpack.c.h.b16 %v342
    %v395 = vunpack.c.l.b16 %v343
    %v396 = vunpack.c.h.b16 %v343
    %v397 = vunpack.c.l.b16 %v344
    %v398 = vunpack.c.h.b16 %v344
    %v399 = vpack.c.b16 %v369, %v367
    %v400 = vpack.c.b16 %v370, %v368
    %v401 = vpack.c.b16 %v373, %v371
    %v402 = vpack.c.b16 %v374, %v372
    %v403 = vpack.c.b16 %v377, %v375
    %v404 = vpack.c.b16 %v378, %v376
    %v405 = vpack.c.b16 %v381, %v379
    %v406 = vpack.c.b16 %v382, %v380
    %v407 = vpack.c.b16 %v385, %v383
    %v408 = vpack.c.b16 %v386, %v384
    %v409 = vpack.c.b16 %v389, %v387
    %v410 = vpack.c.b16 %v390, %v388
    %v411 = vpack.c.b16 %v393, %v391
    %v412 = vpack.c.b16 %v394, %v392
    %v413 = vpack.c.b16 %v397, %v395
    %v414 = vpack.c.b16 %v398, %v396
    %431 = vmatpush.bf16.msra.mxu0 %v413
    %432 = vmatpush.bf16.msra.mxu0 %v411
    %433 = vmatpush.bf16.msra.mxu0 %v409
    %434 = vmatpush.bf16.msra.mxu0 %v407
    %435 = vmatpush.bf16.msra.mxu0 %v405
    %436 = vmatpush.bf16.msra.mxu0 %v403
    %437 = vmatpush.bf16.msra.mxu0 %v401
    %438 = vmatpush.bf16.msra.mxu0 %v399
    %439 = vmatmul.bf16.gmra.mxu0 %v328
    %v440 = vpop.f32.mrf.mxu0
    %v441 = vadd.f32 %v347, %v440
    %v442 = vpop.f32.mrf.mxu0
    %v443 = vadd.f32 %v347, %v442
    %444 = vdwg.mxu0
    %445 = vmatpush.bf16.msra.mxu0 %v414
    %446 = vmatpush.bf16.msra.mxu0 %v412
    %447 = vmatpush.bf16.msra.mxu0 %v410
    %448 = vmatpush.bf16.msra.mxu0 %v408
    %449 = vmatpush.bf16.msra.mxu0 %v406
    %450 = vmatpush.bf16.msra.mxu0 %v404
    %451 = vmatpush.bf16.msra.mxu0 %v402
    %452 = vmatpush.bf16.msra.mxu0 %v400
    %453 = vmatmul.bf16.gmra.mxu0 %v328
    %v454 = vpop.f32.mrf.mxu0
    %v455 = vadd.f32 %v348, %v454
    %v456 = vpop.f32.mrf.mxu0
    %v457 = vadd.f32 %v348, %v456
    %458 = vdwg.mxu0
    %459 = vst [vmem:[%s7] sm:$0xff] %v441
    %460 = vst [vmem:[%s7 + $0x8] sm:$0xff] %v455
    %461 = vst [vmem:[%s7 + $0x10] sm:$0xff] %v443
    %462 = vst [vmem:[%s7 + $0x18] sm:$0xff] %v457
    // Predicated region
    $region42: #{_forward_impl.1} parent=1 // pred_check
      _
    $region43: #{_forward_impl.1} parent=1 // pred_check_branch
      %464 = sbr.rel (0) target = $region45
    $region44: #{_forward_impl.1} parent=1 // pred_region
      _
    $region45: #{_forward_impl.1} parent=1 // pred_fallthru
      _
    // Predicated region
    $region46: #{_forward_impl.1} parent=1 // pred_check
      _
    $region47: #{_forward_impl.1} parent=1 // pred_check_branch
      %466 = sbr.rel (0) target = $region49
    $region48: #{_forward_impl.1} parent=1 // pred_region
      _
    $region49: #{_forward_impl.1} parent=1 // pred_fallthru
      _
    %467 = vsyncpa [#allocation3], 1
    %468 = vsyncpa [#allocation5], 1

</llo_original>
